<compile_context>
chip_gen: v5e
topology: v5e:2x2
jax: 0.10.0
libtpu: 0.0.40
codegen_flags: <defaults>
</compile_context>

<pallas_src>
import jax
import jax.numpy as jnp
from jax.experimental import pallas as pl
from jax.experimental.pallas import tpu as pltpu


# ---------------------------------------------------------------------------
# kernels (feature-major; static sublane-range slice-writes, no concatenate)
# ---------------------------------------------------------------------------
def _rpm_feat_geo(sp_ref, dp_ref, sf_ref, agg_ref, geo_ref):
    P = sp_ref.shape[0]                      # static (=3)
    sp = sp_ref[...]                         # [P, tile_e]
    dp = dp_ref[...]                         # [P, tile_e]
    agg_ref[:P, :] = sp - dp                 # relative position
    agg_ref[P:, :] = sf_ref[...]             # source-feature pass-through
    geo_ref[:P, :] = sp
    geo_ref[P:, :] = dp


def _rpm_feat_nogeo(sp_ref, dp_ref, sf_ref, agg_ref):
    P = sp_ref.shape[0]
    agg_ref[:P, :] = sp_ref[...] - dp_ref[...]
    agg_ref[P:, :] = sf_ref[...]


def _rpm_nofeat_geo(sp_ref, dp_ref, agg_ref, geo_ref):
    P = sp_ref.shape[0]
    sp = sp_ref[...]
    dp = dp_ref[...]
    agg_ref[...] = sp - dp
    geo_ref[:P, :] = sp
    geo_ref[P:, :] = dp


def _rpm_nofeat_nogeo(sp_ref, dp_ref, agg_ref):
    agg_ref[...] = sp_ref[...] - dp_ref[...]


# ---------------------------------------------------------------------------
# tiling helpers
# ---------------------------------------------------------------------------
def _round_up(x, m):
    return ((x + m - 1) // m) * m


def _padded_rows(rows, itemsize):
    """Rows of a VMEM block pad up to the sublane pack (8*4/itemsize)."""
    pack = (8 * 4) // itemsize               # f32 -> 8, bf16 -> 16, int8 -> 32
    return _round_up(rows, pack)


def _pick_tile(E, bytes_per_col_2x, *, vmem_budget=12 * 1024 * 1024,
               max_tile=32768):
    """Choose tile_e (lane-axis block width).

    - Small E: one block covering the full array (block dim == full dim is
      legal w.r.t. the (8,128) rule); per-step overhead is negligible.
    - Large E: a multiple of 128, ~2-4 MB of DMA per step, double-buffered
      footprint under v5e's 16 MiB scoped-VMEM default, and at least ~4 grid
      steps so each v7x TensorCore pipelines >= 2 steps.
    """
    if E <= 4096:
        return E
    cap = max(128, (vmem_budget // bytes_per_col_2x) // 128 * 128)
    tile = min(max_tile, cap)
    tile = min(tile, _round_up(pl.cdiv(E, 4), 128))   # >= 4 programs (megacore)
    tile = max(512, (tile // 128) * 128)
    return tile


# ---------------------------------------------------------------------------
# feature-major (lane-dense) entry point — preferred path
# ---------------------------------------------------------------------------
def relative_position_message_t(src_pos_t, dst_pos_t, src_feat_t=None, *,
                                compute_geo=True):
    """Feature-major RelativePositionMessage.

    Inputs:
      src_pos_t, dst_pos_t : [P, E]
      src_feat_t           : [C, E] or None
    Returns:
      compute_geo=True : (agg_t [P+C, E], geo_t [2P, E])
      compute_geo=False: agg_t [P+C, E]   (geo is a pure copy of the inputs;
                          keep src_pos_t/dst_pos_t downstream instead.)
    """
    P, E = src_pos_t.shape
    assert dst_pos_t.shape == (P, E)

    dtype = src_pos_t.dtype
    if src_feat_t is not None:
        C = src_feat_t.shape[0]
        assert src_feat_t.shape == (C, E)
        dtype = jnp.promote_types(dtype, src_feat_t.dtype)   # explicit promotion
        src_feat_t = src_feat_t.astype(dtype)
    else:
        C = 0
    src_pos_t = src_pos_t.astype(dtype)
    dst_pos_t = dst_pos_t.astype(dtype)

    itemsize = jnp.dtype(dtype).itemsize
    row_blocks = [P, P]                              # pos inputs
    if src_feat_t is not None:
        row_blocks.append(C)                         # feat input
    row_blocks.append(P + C)                         # agg output
    if compute_geo:
        row_blocks.append(2 * P)                     # geo output
    # sublane-padded, double-buffered bytes per edge column
    bytes_per_col_2x = 2 * itemsize * sum(_padded_rows(r, itemsize)
                                          for r in row_blocks)
    tile_e = _pick_tile(E, bytes_per_col_2x)
    grid = (pl.cdiv(E, tile_e),)                     # ragged last block OK

    def col_spec(d):
        return pl.BlockSpec((d, tile_e), lambda i: (0, i))

    if src_feat_t is not None:
        args = (src_pos_t, dst_pos_t, src_feat_t)
        in_specs = [col_spec(P), col_spec(P), col_spec(C)]
        if compute_geo:
            kernel = _rpm_feat_geo
            out_specs = [col_spec(P + C), col_spec(2 * P)]
            out_shape = [jax.ShapeDtypeStruct((P + C, E), dtype),
                         jax.ShapeDtypeStruct((2 * P, E), dtype)]
        else:
            kernel = _rpm_feat_nogeo
            out_specs = [col_spec(P + C)]
            out_shape = [jax.ShapeDtypeStruct((P + C, E), dtype)]
    else:
        args = (src_pos_t, dst_pos_t)
        in_specs = [col_spec(P), col_spec(P)]
        if compute_geo:
            kernel = _rpm_nofeat_geo
            out_specs = [col_spec(P), col_spec(2 * P)]
            out_shape = [jax.ShapeDtypeStruct((P, E), dtype),
                         jax.ShapeDtypeStruct((2 * P, E), dtype)]
        else:
            kernel = _rpm_nofeat_nogeo
            out_specs = [col_spec(P)]
            out_shape = [jax.ShapeDtypeStruct((P, E), dtype)]

    results = pl.pallas_call(
        kernel,
        out_shape=out_shape,
        grid=grid,
        in_specs=in_specs,
        out_specs=out_specs,
        compiler_params=pltpu.CompilerParams(
            dimension_semantics=("parallel",)),
    )(*args)

    if compute_geo:
        agg_t, geo_t = results
        return agg_t, geo_t
    return results[0]


# ---------------------------------------------------------------------------
# edge-major compatibility wrapper (exact PyTorch-module semantics)
# ---------------------------------------------------------------------------
def relative_position_message(src_pos, dst_pos, src_feat=None, *,
                              compute_geo=True):
    """src_pos/dst_pos [E, 3], src_feat [E, C] -> (agg [E, 3+C], geo [E, 6]).

    NOTE: the .T round-trips are full strided HBM passes; for best performance
    gather feature-major upstream (points.T[:, ids]) and call
    relative_position_message_t directly.
    """
    out = relative_position_message_t(
        src_pos.T, dst_pos.T, None if src_feat is None else src_feat.T,
        compute_geo=compute_geo)
    if compute_geo:
        agg_t, geo_t = out
        return agg_t.T, geo_t.T
    return out.T


def _reference(src_pos, dst_pos, src_feat=None):
    rel = src_pos - dst_pos
    agg = jnp.concatenate([rel, src_feat], axis=1) if src_feat is not None else rel
    geo = jnp.concatenate([src_pos, dst_pos], axis=1)
    return agg, geo


if __name__ == "__main__":
    key = jax.random.PRNGKey(0)
    k1, k2, k3, k4, k5 = jax.random.split(key, 5)

    # Small synthetic graph: 8 points, n_neighbor = 8 -> E = 64 edges.
    n_points, n_neighbor, pos_dim, feat_dim = 8, 8, 3, 4
    E = n_points * n_neighbor

    points = jax.random.normal(k1, (n_points, pos_dim), dtype=jnp.float32)
    feats = jax.random.normal(k2, (n_points, feat_dim), dtype=jnp.float32)
    nbr_idx = jax.random.randint(k3, (n_points, n_neighbor), 0, n_points)

    src_ids = nbr_idx.reshape(-1)                              # [E]
    dst_ids = jnp.repeat(jnp.arange(n_points), n_neighbor)     # [E]

    # --- preferred lane-dense path: gather feature-major (from points.T) ----
    points_t, feats_t = points.T, feats.T                      # [3,N], [C,N]
    src_pos_t = points_t[:, src_ids]                           # [3, E]
    dst_pos_t = points_t[:, dst_ids]                           # [3, E]
    src_feat_t = feats_t[:, src_ids]                           # [C, E]

    agg_t, geo_t = relative_position_message_t(src_pos_t, dst_pos_t, src_feat_t)
    jax.block_until_ready((agg_t, geo_t))

    src_pos, dst_pos, src_feat = points[src_ids], points[dst_ids], feats[src_ids]
    agg_ref, geo_ref = _reference(src_pos, dst_pos, src_feat)
    assert agg_t.shape == (pos_dim + feat_dim, E)
    assert geo_t.shape == (2 * pos_dim, E)
    assert jnp.allclose(agg_t.T, agg_ref, atol=1e-6)
    assert jnp.allclose(geo_t.T, geo_ref, atol=1e-6)

    # --- geo-skipping path (pure-copy rows never re-written) ---------------
    agg_only = relative_position_message_t(src_pos_t, dst_pos_t, src_feat_t,
                                           compute_geo=False)
    jax.block_until_ready(agg_only)
    assert jnp.allclose(agg_only.T, agg_ref, atol=1e-6)

    # --- edge-major wrapper, exact module API ------------------------------
    agg, geo = relative_position_message(src_pos, dst_pos, src_feat)
    jax.block_until_ready((agg, geo))
    assert jnp.allclose(agg, agg_ref, atol=1e-6)
    assert jnp.allclose(geo, geo_ref, atol=1e-6)

    # --- no-feat branch + multi-block ragged grid (E not tile-aligned) -----
    E2 = 4500                                     # > 4096 -> tiled; ragged tail
    sp2 = jax.random.normal(k4, (pos_dim, E2), dtype=jnp.float32)
    dp2 = jax.random.normal(k5, (pos_dim, E2), dtype=jnp.float32)
    agg2_t, geo2_t = relative_position_message_t(sp2, dp2, None)
    jax.block_until_ready((agg2_t, geo2_t))
    agg2_ref, geo2_ref = _reference(sp2.T, dp2.T, None)
    assert agg2_t.shape == (pos_dim, E2)
    assert geo2_t.shape == (2 * pos_dim, E2)
    assert jnp.allclose(agg2_t.T, agg2_ref, atol=1e-6)
    assert jnp.allclose(geo2_t.T, geo2_ref, atol=1e-6)

    print("KERNEL_OK")
</pallas_src>

<mosaic_0001>
module attributes {stable_mosaic.version = 11 : i64} {
  func.func @_rpm_feat_geo(%arg0: i32, %arg1: memref<3x64xf32, #tpu.memory_space<vmem>>, %arg2: memref<3x64xf32, #tpu.memory_space<vmem>>, %arg3: memref<4x64xf32, #tpu.memory_space<vmem>>, %arg4: memref<7x64xf32, #tpu.memory_space<vmem>>, %arg5: memref<6x64xf32, #tpu.memory_space<vmem>>) attributes {dimension_semantics = [#tpu.dimension_semantics<parallel>], iteration_bounds = array<i64: 1>, scalar_prefetch = 0 : i64, scratch_operands = 0 : i64, tpu.core_type = #tpu.core_type<tc>, window_params = [{transform_indices = @transform_0, window_bounds = array<i64: 3, 64>}, {transform_indices = @transform_1, window_bounds = array<i64: 3, 64>}, {transform_indices = @transform_2, window_bounds = array<i64: 4, 64>}, {transform_indices = @transform_3, window_bounds = array<i64: 7, 64>}, {transform_indices = @transform_4, window_bounds = array<i64: 6, 64>}]} {
    %c0 = arith.constant 0 : index
    %c0_0 = arith.constant 0 : index
    %0 = vector.load %arg1[%c0, %c0_0] : memref<3x64xf32, #tpu.memory_space<vmem>>, vector<3x64xf32>
    %c0_1 = arith.constant 0 : index
    %c0_2 = arith.constant 0 : index
    %1 = vector.load %arg2[%c0_1, %c0_2] : memref<3x64xf32, #tpu.memory_space<vmem>>, vector<3x64xf32>
    %2 = arith.subf %0, %1 : vector<3x64xf32>
    %c0_3 = arith.constant 0 : index
    %c0_4 = arith.constant 0 : index
    %3 = vector.load %arg4[%c0_3, %c0_4] : memref<7x64xf32, #tpu.memory_space<vmem>>, vector<3x64xf32>
    tpu.vector_store %arg4[%c0_3, %c0_4], %2 {strides = array<i32>} : memref<7x64xf32, #tpu.memory_space<vmem>>, vector<3x64xf32>,
    %c0_5 = arith.constant 0 : index
    %c0_6 = arith.constant 0 : index
    %4 = vector.load %arg3[%c0_5, %c0_6] : memref<4x64xf32, #tpu.memory_space<vmem>>, vector<4x64xf32>
    %c3 = arith.constant 3 : index
    %c0_7 = arith.constant 0 : index
    %5 = vector.load %arg4[%c3, %c0_7] : memref<7x64xf32, #tpu.memory_space<vmem>>, vector<4x64xf32>
    tpu.vector_store %arg4[%c3, %c0_7], %4 {strides = array<i32>} : memref<7x64xf32, #tpu.memory_space<vmem>>, vector<4x64xf32>,
    %c0_8 = arith.constant 0 : index
    %c0_9 = arith.constant 0 : index
    %6 = vector.load %arg5[%c0_8, %c0_9] : memref<6x64xf32, #tpu.memory_space<vmem>>, vector<3x64xf32>
    tpu.vector_store %arg5[%c0_8, %c0_9], %0 {strides = array<i32>} : memref<6x64xf32, #tpu.memory_space<vmem>>, vector<3x64xf32>,
    %c3_10 = arith.constant 3 : index
    %c0_11 = arith.constant 0 : index
    %7 = vector.load %arg5[%c3_10, %c0_11] : memref<6x64xf32, #tpu.memory_space<vmem>>, vector<3x64xf32>
    tpu.vector_store %arg5[%c3_10, %c0_11], %1 {strides = array<i32>} : memref<6x64xf32, #tpu.memory_space<vmem>>, vector<3x64xf32>,
    return
  }
  func.func @transform_0(%arg0: i32) -> (i32, i32) {
    %c0_i32 = arith.constant 0 : i32
    %c0_i32_0 = arith.constant 0 : i32
    return %c0_i32, %arg0 : i32, i32
  }
  func.func @transform_1(%arg0: i32) -> (i32, i32) {
    %c0_i32 = arith.constant 0 : i32
    %c0_i32_0 = arith.constant 0 : i32
    return %c0_i32, %arg0 : i32, i32
  }
  func.func @transform_2(%arg0: i32) -> (i32, i32) {
    %c0_i32 = arith.constant 0 : i32
    %c0_i32_0 = arith.constant 0 : i32
    return %c0_i32, %arg0 : i32, i32
  }
  func.func @transform_3(%arg0: i32) -> (i32, i32) {
    %c0_i32 = arith.constant 0 : i32
    %c0_i32_0 = arith.constant 0 : i32
    return %c0_i32, %arg0 : i32, i32
  }
  func.func @transform_4(%arg0: i32) -> (i32, i32) {
    %c0_i32 = arith.constant 0 : i32
    %c0_i32_0 = arith.constant 0 : i32
    return %c0_i32, %arg0 : i32, i32
  }
}

</mosaic_0001>

<llo_original>
// kernel: tpu_custom_call.1
$region0: #{tpu_custom_call.1}
  #allocation0 [shape = 'u32[]', space=smem, size = 0x4, offset = 0x4, fixed_abs, tag = 'smem constant byte address 0x4 - core index']
  #allocation1 [shape = 'u32[72,128]{1,0:T(1,128)}', space=vmem, size = 0x9000, scoped, tag = 'internal scratch']
  %s0 = inlined_call_operand.hbm [shape: f32[3,64], index: 0, kind: input, shape index: {}]
  %s1 = inlined_call_operand.hbm [shape: f32[3,64], index: 1, kind: input, shape index: {}]
  %s2 = inlined_call_operand.hbm [shape: f32[4,64], index: 2, kind: input, shape index: {}]
  %s3 = inlined_call_operand.hbm [shape: f32[7,64], index: 3, kind: output, shape index: {0}]
  %s4 = inlined_call_operand.hbm [shape: f32[6,64], index: 4, kind: output, shape index: {1}]
  %5 = xla_tuple %s3, %s4
  %s6 = sld [smem:[#allocation0]]
  $region42: #{tpu_custom_call.1} parent=0
    _
  %s8 = ssub.s32 1, %s6
  %s9 = scalar_select 0, %s8, %s6
  $region1: #{tpu_custom_call.1} parent=0
    #allocation2 [shape = 'u8[2048]{0}', space=vmem, size = 0x800, scoped, tag = 'input window, operand 0, single buffered']
    #allocation3 [shape = 's32[1]{0}', space=sflag, size = 0x4, scoped, tag = 'scoped memory for tpu_custom_call.1']
    #allocation4 [shape = 's32[1]{0}', space=sflag, size = 0x4, scoped, tag = 'scoped memory for tpu_custom_call.1']
    #allocation5 [shape = 'u8[2048]{0}', space=vmem, size = 0x800, scoped, tag = 'input window, operand 1, single buffered']
    #allocation6 [shape = 's32[1]{0}', space=sflag, size = 0x4, scoped, tag = 'scoped memory for tpu_custom_call.1']
    #allocation7 [shape = 'u8[2048]{0}', space=vmem, size = 0x800, scoped, tag = 'input window, operand 2, single buffered']
    #allocation8 [shape = 'u8[4096]{0}', space=vmem, size = 0x1000, scoped, tag = 'output window, operand 0, single buffered']
    #allocation9 [shape = 'u8[4096]{0}', space=vmem, size = 0x1000, scoped, tag = 'output window, operand 1, single buffered']
    #allocation10 [shape = 's32[1]{0}', space=sflag, size = 0x4, scoped, tag = 'scoped memory for tpu_custom_call.1']
    %10 = vsyncpa [#allocation3], 0
    %11 = vsyncpa [#allocation6], 0
    %12 = vsyncpa [#allocation4], 0
    %13 = vsyncpa [#allocation10], 0
    // Predicated region
    $region2: #{tpu_custom_call.1} parent=1 // pred_check
      _
    $region3: #{tpu_custom_call.1} parent=1 // pred_check_branch
      %15 = sbr.rel (0) target = $region5
    $region4: #{tpu_custom_call.1} parent=1 // pred_region
      %17 = vsyncadd [#allocation3], 0
      %s19 = sshll.u32 %s0, 4
      %s20 = int_to_ptr.hbm [resolvable:$true] %s19
      %s21 = sshll.u32 [#allocation2], 4
      %s22 = int_to_ptr.vmem [resolvable:$true] %s21
      %24 = dma.hbm_to_vmem [thread:$0]  %s20, 64, %s22, [#allocation3]
    $region5: #{tpu_custom_call.1} parent=1 // pred_fallthru
      _
    // Predicated region
    $region6: #{tpu_custom_call.1} parent=1 // pred_check
      _
    $region7: #{tpu_custom_call.1} parent=1 // pred_check_branch
      %26 = sbr.rel (0) target = $region9
    $region8: #{tpu_custom_call.1} parent=1 // pred_region
      %28 = vsyncadd [#allocation6], 0
      %s30 = sshll.u32 %s1, 4
      %s31 = int_to_ptr.hbm [resolvable:$true] %s30
      %s32 = sshll.u32 [#allocation5], 4
      %s33 = int_to_ptr.vmem [resolvable:$true] %s32
      %35 = dma.hbm_to_vmem [thread:$0]  %s31, 64, %s33, [#allocation6]
    $region9: #{tpu_custom_call.1} parent=1 // pred_fallthru
      _
    // Predicated region
    $region10: #{tpu_custom_call.1} parent=1 // pred_check
      _
    $region11: #{tpu_custom_call.1} parent=1 // pred_check_branch
      %37 = sbr.rel (0) target = $region13
    $region12: #{tpu_custom_call.1} parent=1 // pred_region
      %39 = vsyncadd [#allocation6], 0
      %s41 = sshll.u32 %s2, 4
      %s42 = int_to_ptr.hbm [resolvable:$true] %s41
      %s43 = sshll.u32 [#allocation7], 4
      %s44 = int_to_ptr.vmem [resolvable:$true] %s43
      %46 = dma.hbm_to_vmem [thread:$0]  %s42, 64, %s44, [#allocation6]
    $region13: #{tpu_custom_call.1} parent=1 // pred_fallthru
      _
    // Predicated region
    $region14: #{tpu_custom_call.1} parent=1 // pred_check
      _
    $region15: #{tpu_custom_call.1} parent=1 // pred_check_branch
      %48 = sbr.rel (0) target = $region17
    $region16: #{tpu_custom_call.1} parent=1 // pred_region
      %50 = dma.done [#allocation3], 64
    $region17: #{tpu_custom_call.1} parent=1 // pred_fallthru
      _
    // Predicated region
    $region18: #{tpu_custom_call.1} parent=1 // pred_check
      _
    $region19: #{tpu_custom_call.1} parent=1 // pred_check_branch
      %52 = sbr.rel (0) target = $region21
    $region20: #{tpu_custom_call.1} parent=1 // pred_region
      %54 = dma.done [#allocation6], 64
    $region21: #{tpu_custom_call.1} parent=1 // pred_fallthru
      _
    // Predicated region
    $region22: #{tpu_custom_call.1} parent=1 // pred_check
      _
    $region23: #{tpu_custom_call.1} parent=1 // pred_check_branch
      %56 = sbr.rel (0) target = $region25
    $region24: #{tpu_custom_call.1} parent=1 // pred_region
      %58 = dma.done [#allocation6], 64
    $region25: #{tpu_custom_call.1} parent=1 // pred_fallthru
      _
    %v59 = vld [vmem:[#allocation2] sm:$0x7]
    %v60 = vld [vmem:[#allocation5] sm:$0x7]
    %v61 = vsub.f32 %v59, %v60
    %vm62 = vcmask 518144
    %63 = vst.msk [vmem:[#allocation8] sm:$0x7] %vm62, %v61
    %v64 = vld [vmem:[#allocation7] sm:$0xf]
    %vm65 = vcmask 519168
    %66 = vst.msk [vmem:[#allocation8 + $0x3] sm:$0xf] %vm65, %v64
    %67 = vst.msk [vmem:[#allocation9] sm:$0x7] %vm62, %v59
    %68 = vst.msk [vmem:[#allocation9 + $0x3] sm:$0x7] %vm62, %v60
    // Predicated region
    $region26: #{tpu_custom_call.1} parent=1 // pred_check
      _
    $region27: #{tpu_custom_call.1} parent=1 // pred_check_branch
      %70 = sbr.rel (0) target = $region29
    $region28: #{tpu_custom_call.1} parent=1 // pred_region
      %72 = vsyncadd [#allocation4], 0
      %s74 = sshll.u32 [#allocation8], 4
      %s75 = int_to_ptr.vmem [resolvable:$true] %s74
      %s76 = sshll.u32 %s3, 4
      %s77 = int_to_ptr.hbm [resolvable:$true] %s76
      %79 = dma.vmem_to_hbm [thread:$0]  %s75, 128, %s77, [#allocation4]
    $region29: #{tpu_custom_call.1} parent=1 // pred_fallthru
      _
    // Predicated region
    $region30: #{tpu_custom_call.1} parent=1 // pred_check
      _
    $region31: #{tpu_custom_call.1} parent=1 // pred_check_branch
      %81 = sbr.rel (0) target = $region33
    $region32: #{tpu_custom_call.1} parent=1 // pred_region
      %83 = vsyncadd [#allocation10], 0
      %s85 = sshll.u32 [#allocation9], 4
      %s86 = int_to_ptr.vmem [resolvable:$true] %s85
      %s87 = sshll.u32 %s4, 4
      %s88 = int_to_ptr.hbm [resolvable:$true] %s87
      %90 = dma.vmem_to_hbm [thread:$0]  %s86, 128, %s88, [#allocation10]
    $region33: #{tpu_custom_call.1} parent=1 // pred_fallthru
      _
    // Predicated region
    $region34: #{tpu_custom_call.1} parent=1 // pred_check
      _
    $region35: #{tpu_custom_call.1} parent=1 // pred_check_branch
      %92 = sbr.rel (0) target = $region37
    $region36: #{tpu_custom_call.1} parent=1 // pred_region
      %94 = dma.done [#allocation4], 128
    $region37: #{tpu_custom_call.1} parent=1 // pred_fallthru
      _
    // Predicated region
    $region38: #{tpu_custom_call.1} parent=1 // pred_check
      _
    $region39: #{tpu_custom_call.1} parent=1 // pred_check_branch
      %96 = sbr.rel (0) target = $region41
    $region40: #{tpu_custom_call.1} parent=1 // pred_region
      %98 = dma.done [#allocation10], 128
    $region41: #{tpu_custom_call.1} parent=1 // pred_fallthru
      _
    %99 = vsyncpa [#allocation3], 1
    %100 = vsyncpa [#allocation6], 1
    %101 = vsyncpa [#allocation4], 1
    %102 = vsyncpa [#allocation10], 1

</llo_original>
